<compile_context>
chip_gen: v5e
topology: v5e:2x2
jax: 0.10.0
libtpu: 0.0.40
codegen_flags: <defaults>
</compile_context>

<pallas_src>
import functools
import math

import jax
import jax.numpy as jnp
from jax import lax
from jax.experimental import pallas as pl
from jax.experimental.pallas import tpu as pltpu

LANES = 128
SUBLANES = 8
TARGET_BLOCK_BYTES = 2 << 20          # ~2 MiB per input block (sweepable)
_EXP_NEG100 = math.exp(-100.0)        # f32 denormal; matches torch's clamp


def _round_up(x, m):
    return (x + m - 1) // m * m


def _num_tensorcores():
    """2 partials only on v7x (2 TensorCores/chip); 1 elsewhere."""
    try:
        kind = jax.devices()[0].device_kind.lower()
    except Exception:
        return 1
    return 2 if ("v7" in kind or "7x" in kind) else 1


def _focal_loss_kernel(p_ref, t_ref, acc_ref, *, gamma, steps, rows_per_tile,
                       valid_rows, binary_targets, any_ragged):
    c = pl.program_id(0)          # partial / TensorCore axis ("parallel")
    i = pl.program_id(1)          # reduction axis ("arbitrary")

    @pl.when(i == 0)
    def _init():
        acc_ref[...] = jnp.zeros_like(acc_ref)

    p = p_ref[...].astype(jnp.float32)
    t = t_ref[...].astype(jnp.float32)

    if binary_targets:
        # Exact only for 0/1 targets: p_t = p where t==1 else (1-p).
        # 1 transcendental/element instead of 3.
        p_t = t * p + (1.0 - t) * (1.0 - p)
        s = jnp.maximum(jnp.log(p_t), -100.0)          # = -ce
        pt = jnp.maximum(p_t, _EXP_NEG100)             # = exp(-ce)
    else:
        # torch binary_cross_entropy clamps each log term at -100 (so p=0,t=0
        # padding contributes exactly 0 instead of 0*(-inf)=NaN).
        log_p = jnp.maximum(jnp.log(p), -100.0)
        log_1mp = jnp.maximum(jnp.log(1.0 - p), -100.0)
        s = t * log_p + (1.0 - t) * log_1mp            # = -ce
        pt = jnp.exp(s)

    ce = -s
    one_minus_pt = 1.0 - pt
    if gamma == 2.0:
        w = jnp.square(one_minus_pt)
    elif float(gamma).is_integer():
        w = lax.integer_pow(one_minus_pt, int(gamma))
    else:
        w = one_minus_pt ** gamma
    fl = w * ce        # alpha folded into the scalar epilogue

    def _fold(x):
        # (R,128) -> (R//8, 8, 128) preserves the (8,128) tiling; VPU-only sum
        # into the resident (8,128) accumulator.
        return jnp.sum(x.reshape(rows_per_tile // SUBLANES, SUBLANES, LANES), axis=0)

    if not any_ragged:
        acc_ref[...] += _fold(fl)
    else:
        row_base = (c * steps + i) * rows_per_tile
        is_full = row_base + rows_per_tile <= valid_rows

        @pl.when(is_full)
        def _full_tile():
            acc_ref[...] += _fold(fl)

        @pl.when(jnp.logical_not(is_full))
        def _tail_tile():
            # Out-of-bounds rows of the last block hold garbage: must SELECT
            # them away (not multiply-by-mask) so NaN/Inf can't leak in.
            rows_left = valid_rows - row_base
            row_ids = lax.broadcasted_iota(jnp.int32, (rows_per_tile, 1), 0)
            fl_m = jnp.where(row_ids < rows_left, fl, 0.0)
            acc_ref[...] += _fold(fl_m)


def focal_loss(inputs, targets, alpha=0.25, gamma=2.0, *,
               binary_targets=False, num_partials=None):
    """inputs/targets: same-shaped arrays of probabilities / targets (any shape)."""
    n_valid = int(inputs.size)

    itemsize = jnp.dtype(inputs.dtype).itemsize
    sub_mult = SUBLANES * max(1, 4 // itemsize)         # f32->8, bf16->16, int8->32
    max_rows = max(sub_mult,
                   (TARGET_BLOCK_BYTES // (LANES * itemsize)) // sub_mult * sub_mult)

    # Keep native dtype: the kernel casts to f32 after load (bf16 halves HBM bytes).
    p = inputs.reshape(-1)
    t = targets.reshape(-1)

    elems = n_valid
    if elems % LANES:
        # TODO(synk): this full-array copy only triggers when the element count
        # is not a multiple of 128; avoidable with a separate <128-element tail,
        # but left simple since segmentation losses are virtually always aligned.
        pad = LANES - elems % LANES
        p = jnp.pad(p, (0, pad))
        t = jnp.pad(t, (0, pad))
        elems += pad
    arr_rows = elems // LANES

    rows_per_tile = min(max_rows, _round_up(arr_rows, sub_mult))
    if rows_per_tile > arr_rows:
        # Array smaller than one block: zero-pad up to a single (8,128)-aligned
        # block (cost bounded by ~2 MiB). p=0,t=0 contributes exactly 0.
        pad_rows = rows_per_tile - arr_rows
        p = jnp.pad(p, (0, pad_rows * LANES))
        t = jnp.pad(t, (0, pad_rows * LANES))
        arr_rows = rows_per_tile

    p2 = p.reshape(arr_rows, LANES)
    t2 = t.reshape(arr_rows, LANES)

    total_tiles = pl.cdiv(arr_rows, rows_per_tile)
    if num_partials is None:
        num_partials = _num_tensorcores() if total_tiles >= 2 else 1
    num_partials = max(1, min(int(num_partials), total_tiles))
    steps = pl.cdiv(total_tiles, num_partials)

    # Ragged handling needed if the last tile overhangs the array, or if the
    # partial split over-covers the tile range (clamped duplicate tiles).
    any_ragged = (arr_rows % rows_per_tile != 0) or (num_partials * steps != total_tiles)

    last_tile = total_tiles - 1
    if num_partials * steps == total_tiles:
        in_map = lambda c, i: (c * steps + i, 0)
    else:
        # Clamp so no block is ever fully out of bounds; clamped duplicates are
        # zeroed by the in-kernel mask (row_base >= valid_rows).
        in_map = lambda c, i: (jnp.minimum(c * steps + i, last_tile), 0)

    kernel = functools.partial(
        _focal_loss_kernel, gamma=float(gamma), steps=steps,
        rows_per_tile=rows_per_tile, valid_rows=arr_rows,
        binary_targets=bool(binary_targets), any_ragged=any_ragged)

    block_bytes = rows_per_tile * LANES * itemsize
    vmem_limit = int(min(max(4 * block_bytes + (8 << 20), 16 << 20), 48 << 20))

    partials = pl.pallas_call(
        kernel,
        out_shape=jax.ShapeDtypeStruct((num_partials, SUBLANES, LANES), jnp.float32),
        grid=(num_partials, steps),
        in_specs=[
            pl.BlockSpec((rows_per_tile, LANES), in_map),
            pl.BlockSpec((rows_per_tile, LANES), in_map),
        ],
        # Output block stays resident across the reduction axis (accumulator).
        out_specs=pl.BlockSpec((None, SUBLANES, LANES), lambda c, i: (c, 0, 0)),
        compiler_params=pltpu.CompilerParams(
            dimension_semantics=("parallel", "arbitrary"),
            vmem_limit_bytes=vmem_limit,
        ),
    )(p2, t2)

    # Tiny finishing reduction (at most 2*8*128 f32), alpha + mean epilogue.
    return jnp.float32(alpha) * jnp.sum(partials) / jnp.float32(n_valid)


def _focal_loss_ref(inputs, targets, alpha=0.25, gamma=2.0):
    p = inputs.astype(jnp.float32)
    t = targets.astype(jnp.float32)
    ce = -(t * jnp.maximum(jnp.log(p), -100.0)
           + (1.0 - t) * jnp.maximum(jnp.log(1.0 - p), -100.0))
    pt = jnp.exp(-ce)
    return jnp.mean(alpha * (1.0 - pt) ** gamma * ce)


if __name__ == "__main__":
    key = jax.random.PRNGKey(0)

    def make(shape, k):
        k1, k2 = jax.random.split(k)
        probs = jax.nn.sigmoid(jax.random.normal(k1, shape, dtype=jnp.float32))
        tgts = (jax.random.uniform(k2, shape) > 0.5).astype(jnp.float32)
        return probs, tgts

    k1, k2, k3 = jax.random.split(key, 3)

    # (1) Module-sized NCHW input (tile-exact path, zero host-side copies).
    x1, y1 = make((2, 4, 16, 16), k1)
    # (2) Large, 128-aligned but not tile-aligned -> exercises in-kernel tail mask.
    x2, y2 = make((4098, 128), k2)
    # (3) Tiny, not 128-aligned -> exercises the bounded zero-pad fallback.
    x3, y3 = make((3, 5, 7), k3)

    ok = True
    for x, y in ((x1, y1), (x2, y2), (x3, y3)):
        out = jax.block_until_ready(focal_loss(x, y))
        ref = jax.block_until_ready(_focal_loss_ref(x, y))
        ok = ok and bool(jnp.allclose(out, ref, rtol=5e-5, atol=1e-6))

    # Binary-target fast path (exact for 0/1 targets).
    out_b = jax.block_until_ready(focal_loss(x1, y1, binary_targets=True))
    ref_b = jax.block_until_ready(_focal_loss_ref(x1, y1))
    ok = ok and bool(jnp.allclose(out_b, ref_b, rtol=5e-5, atol=1e-6))

    assert ok, "focal loss kernel mismatch vs reference"
    print("KERNEL_OK")
</pallas_src>

<mosaic_0001>
module attributes {stable_mosaic.version = 11 : i64} {
  func.func @_focal_loss_kernel(%arg0: i32, %arg1: i32, %arg2: memref<16x128xf32, #tpu.memory_space<vmem>>, %arg3: memref<16x128xf32, #tpu.memory_space<vmem>>, %arg4: memref<1x8x128xf32, #tpu.memory_space<vmem>>) attributes {dimension_semantics = [#tpu.dimension_semantics<parallel>, #tpu.dimension_semantics<arbitrary>], iteration_bounds = array<i64: 1, 1>, scalar_prefetch = 0 : i64, scratch_operands = 0 : i64, tpu.core_type = #tpu.core_type<tc>, window_params = [{transform_indices = @transform_0, window_bounds = array<i64: 16, 128>}, {transform_indices = @transform_1, window_bounds = array<i64: 16, 128>}, {transform_indices = @transform_2, window_bounds = array<i64: 1, 8, 128>}]} {
    %c0_i32 = arith.constant 0 : i32
    %0 = arith.cmpi eq, %arg1, %c0_i32 : i32
    %1 = arith.extui %0 : i1 to i32
    %c0_i32_0 = arith.constant 0 : i32
    %2 = arith.cmpi ne, %1, %c0_i32_0 : i32
    scf.if %2 {
      %cst_16 = arith.constant 0.000000e+00 : f32
      %33 = vector.broadcast %cst_16 : f32 to vector<8x128xf32>
      %c0_17 = arith.constant 0 : index
      %c0_18 = arith.constant 0 : index
      %c0_19 = arith.constant 0 : index
      %34 = vector.load %arg4[%c0_17, %c0_18, %c0_19] : memref<1x8x128xf32, #tpu.memory_space<vmem>>, vector<1x8x128xf32>
      %35 = vector.shape_cast %34 : vector<1x8x128xf32> to vector<8x128xf32>
      %36 = vector.shape_cast %33 : vector<8x128xf32> to vector<1x8x128xf32>
      tpu.vector_store %arg4[%c0_17, %c0_18, %c0_19], %36 {strides = array<i32>} : memref<1x8x128xf32, #tpu.memory_space<vmem>>, vector<1x8x128xf32>,
    } else {
    }
    %c0 = arith.constant 0 : index
    %c0_1 = arith.constant 0 : index
    %3 = vector.load %arg2[%c0, %c0_1] : memref<16x128xf32, #tpu.memory_space<vmem>>, vector<16x128xf32>
    %c0_2 = arith.constant 0 : index
    %c0_3 = arith.constant 0 : index
    %4 = vector.load %arg3[%c0_2, %c0_3] : memref<16x128xf32, #tpu.memory_space<vmem>>, vector<16x128xf32>
    %5 = math.log %3 : vector<16x128xf32>
    %cst = arith.constant -1.000000e+02 : f32
    %6 = vector.broadcast %cst : f32 to vector<16x128xf32>
    %7 = arith.maximumf %5, %6 : vector<16x128xf32>
    %cst_4 = arith.constant 1.000000e+00 : f32
    %8 = vector.broadcast %cst_4 : f32 to vector<16x128xf32>
    %9 = arith.subf %8, %3 : vector<16x128xf32>
    %10 = math.log %9 : vector<16x128xf32>
    %cst_5 = arith.constant -1.000000e+02 : f32
    %11 = vector.broadcast %cst_5 : f32 to vector<16x128xf32>
    %12 = arith.maximumf %10, %11 : vector<16x128xf32>
    %13 = arith.mulf %4, %7 : vector<16x128xf32>
    %cst_6 = arith.constant 1.000000e+00 : f32
    %14 = vector.broadcast %cst_6 : f32 to vector<16x128xf32>
    %15 = arith.subf %14, %4 : vector<16x128xf32>
    %16 = arith.mulf %15, %12 : vector<16x128xf32>
    %17 = arith.addf %13, %16 : vector<16x128xf32>
    %18 = math.exp %17 : vector<16x128xf32>
    %cst_7 = arith.constant 0.000000e+00 : f32
    %19 = vector.broadcast %cst_7 : f32 to vector<16x128xf32>
    %20 = arith.subf %19, %17 : vector<16x128xf32>
    %cst_8 = arith.constant 1.000000e+00 : f32
    %21 = vector.broadcast %cst_8 : f32 to vector<16x128xf32>
    %22 = arith.subf %21, %18 : vector<16x128xf32>
    %23 = arith.mulf %22, %22 : vector<16x128xf32>
    %24 = arith.mulf %23, %20 : vector<16x128xf32>
    %c0_9 = arith.constant 0 : index
    %c0_10 = arith.constant 0 : index
    %c0_11 = arith.constant 0 : index
    %25 = vector.load %arg4[%c0_9, %c0_10, %c0_11] : memref<1x8x128xf32, #tpu.memory_space<vmem>>, vector<1x8x128xf32>
    %26 = vector.shape_cast %25 : vector<1x8x128xf32> to vector<8x128xf32>
    %27 = vector.shape_cast %24 : vector<16x128xf32> to vector<2x8x128xf32>
    %cst_12 = arith.constant dense<0.000000e+00> : vector<8x128xf32>
    %28 = vector.multi_reduction <add>, %27, %cst_12 [0] : vector<2x8x128xf32> to vector<8x128xf32>
    %29 = arith.addf %26, %28 : vector<8x128xf32>
    %c0_13 = arith.constant 0 : index
    %c0_14 = arith.constant 0 : index
    %c0_15 = arith.constant 0 : index
    %30 = vector.load %arg4[%c0_13, %c0_14, %c0_15] : memref<1x8x128xf32, #tpu.memory_space<vmem>>, vector<1x8x128xf32>
    %31 = vector.shape_cast %30 : vector<1x8x128xf32> to vector<8x128xf32>
    %32 = vector.shape_cast %29 : vector<8x128xf32> to vector<1x8x128xf32>
    tpu.vector_store %arg4[%c0_13, %c0_14, %c0_15], %32 {strides = array<i32>} : memref<1x8x128xf32, #tpu.memory_space<vmem>>, vector<1x8x128xf32>,
    return
  }
  func.func @transform_0(%arg0: i32, %arg1: i32) -> (i32, i32) {
    %c1_i32 = arith.constant 1 : i32
    %0 = arith.muli %arg0, %c1_i32 : i32
    %1 = arith.addi %0, %arg1 : i32
    %c0_i32 = arith.constant 0 : i32
    %c0_i32_0 = arith.constant 0 : i32
    return %1, %c0_i32 : i32, i32
  }
  func.func @transform_1(%arg0: i32, %arg1: i32) -> (i32, i32) {
    %c1_i32 = arith.constant 1 : i32
    %0 = arith.muli %arg0, %c1_i32 : i32
    %1 = arith.addi %0, %arg1 : i32
    %c0_i32 = arith.constant 0 : i32
    %c0_i32_0 = arith.constant 0 : i32
    return %1, %c0_i32 : i32, i32
  }
  func.func @transform_2(%arg0: i32, %arg1: i32) -> (i32, i32, i32) {
    %c0_i32 = arith.constant 0 : i32
    %c0_i32_0 = arith.constant 0 : i32
    %c0_i32_1 = arith.constant 0 : i32
    return %arg0, %c0_i32, %c0_i32_0 : i32, i32, i32
  }
}

</mosaic_0001>

<llo_original>
// kernel: tpu_custom_call.1
$region0: #{tpu_custom_call.1}
  #allocation0 [shape = 'u32[]', space=smem, size = 0x4, offset = 0x4, fixed_abs, tag = 'smem constant byte address 0x4 - core index']
  #allocation1 [shape = 'u32[72,128]{1,0:T(1,128)}', space=vmem, size = 0x9000, scoped, tag = 'internal scratch']
  %s0 = inlined_call_operand.hbm [shape: f32[16,128], index: 0, kind: input, shape index: {}]
  %s1 = inlined_call_operand.hbm [shape: f32[16,128], index: 1, kind: input, shape index: {}]
  %s2 = inlined_call_operand.hbm [shape: f32[1,8,128], index: 2, kind: output, shape index: {}]
  %s3 = sld [smem:[#allocation0]]
  $region30: #{tpu_custom_call.1} parent=0
    _
  %s5 = ssub.s32 1, %s3
  %s6 = scalar_select 0, %s5, %s3
  $region1: #{tpu_custom_call.1} parent=0
    #allocation2 [shape = 'u8[8192]{0}', space=vmem, size = 0x2000, scoped, tag = 'input window, operand 0, single buffered']
    #allocation3 [shape = 's32[1]{0}', space=sflag, size = 0x4, scoped, tag = 'scoped memory for tpu_custom_call.1']
    #allocation4 [shape = 's32[1]{0}', space=sflag, size = 0x4, scoped, tag = 'scoped memory for tpu_custom_call.1']
    #allocation5 [shape = 'u8[8192]{0}', space=vmem, size = 0x2000, scoped, tag = 'input window, operand 1, single buffered']
    #allocation6 [shape = 's32[1]{0}', space=sflag, size = 0x4, scoped, tag = 'scoped memory for tpu_custom_call.1']
    #allocation7 [shape = 'u8[4096]{0}', space=vmem, size = 0x1000, scoped, tag = 'output window, operand 0, single buffered']
    %7 = vsyncpa [#allocation3], 0
    %8 = vsyncpa [#allocation6], 0
    %9 = vsyncpa [#allocation4], 0
    // Predicated region
    $region2: #{tpu_custom_call.1} parent=1 // pred_check
      _
    $region3: #{tpu_custom_call.1} parent=1 // pred_check_branch
      %11 = sbr.rel (0) target = $region5
    $region4: #{tpu_custom_call.1} parent=1 // pred_region
      %s12 = sadd.s32 0, 0
      %s13 = smul.u32 2, %s12
      %15 = vsyncadd [#allocation3], 0
      %s16 = smul.addr %s13, 8
      %s17 = scalar_lea.hbm %s0, %s16
      %s18 = sshll.u32 %s17, 4
      %s19 = int_to_ptr.hbm [resolvable:$true] %s18
      %s20 = sshll.u32 [#allocation2], 4
      %s21 = int_to_ptr.vmem [resolvable:$true] %s20
      %26 = dma.hbm_to_vmem [thread:$0]  %s19, 256, %s21, [#allocation3], 128, 128, 8
    $region5: #{tpu_custom_call.1} parent=1 // pred_fallthru
      _
    // Predicated region
    $region6: #{tpu_custom_call.1} parent=1 // pred_check
      _
    $region7: #{tpu_custom_call.1} parent=1 // pred_check_branch
      %28 = sbr.rel (0) target = $region9
    $region8: #{tpu_custom_call.1} parent=1 // pred_region
      %s29 = sadd.s32 0, 0
      %s30 = smul.u32 2, %s29
      %32 = vsyncadd [#allocation6], 0
      %s33 = smul.addr %s30, 8
      %s34 = scalar_lea.hbm %s1, %s33
      %s35 = sshll.u32 %s34, 4
      %s36 = int_to_ptr.hbm [resolvable:$true] %s35
      %s37 = sshll.u32 [#allocation5], 4
      %s38 = int_to_ptr.vmem [resolvable:$true] %s37
      %43 = dma.hbm_to_vmem [thread:$0]  %s36, 256, %s38, [#allocation6], 128, 128, 8
    $region9: #{tpu_custom_call.1} parent=1 // pred_fallthru
      _
    // Predicated region
    $region10: #{tpu_custom_call.1} parent=1 // pred_check
      _
    $region11: #{tpu_custom_call.1} parent=1 // pred_check_branch
      %45 = sbr.rel (0) target = $region13
    $region12: #{tpu_custom_call.1} parent=1 // pred_region
      %47 = dma.done [#allocation3], 256
    $region13: #{tpu_custom_call.1} parent=1 // pred_fallthru
      _
    // Predicated region
    $region14: #{tpu_custom_call.1} parent=1 // pred_check
      _
    $region15: #{tpu_custom_call.1} parent=1 // pred_check_branch
      %49 = sbr.rel (0) target = $region17
    $region16: #{tpu_custom_call.1} parent=1 // pred_region
      %51 = dma.done [#allocation6], 256
    $region17: #{tpu_custom_call.1} parent=1 // pred_fallthru
      _
    %s52 = sadd.s32 0, 0
    %s53 = smul.u32 2, %s52
    %s54 = sadd.s32 0, 0
    %s55 = smul.u32 2, %s54
    %p56 = scmp.eq.s32.totalorder 0, 0
    // Predicated region
    $region18: #{tpu_custom_call.1} parent=1 // pred_check
      %p57 = pneg %p56
    $region19: #{tpu_custom_call.1} parent=1 // pred_check_branch
      %59 = sbr.rel (%p57) target = $region21
    $region20: #{tpu_custom_call.1} parent=1 // pred_region
      %60 = vst [vmem:[#allocation7] sm:$0xff] 0.0
    $region21: #{tpu_custom_call.1} parent=1 // pred_fallthru
      _
    %v61 = vld [vmem:[#allocation2] sm:$0xff]
    %v62 = vld [vmem:[#allocation2 + $0x8] sm:$0xff]
    %v63 = vld [vmem:[#allocation5] sm:$0xff]
    %v64 = vld [vmem:[#allocation5 + $0x8] sm:$0xff]
    %v65 = vlog2.pop %v61
    %v66 = vmul.f32 %v65, 0.6931472
    %v67 = vlog2.pop %v62
    %v68 = vmul.f32 %v67, 0.6931472
    %v69 = vmax.f32 %v66, -100.0
    %v70 = vmax.f32 %v68, -100.0
    %v71 = vsub.f32 1.0, %v61
    %v72 = vsub.f32 1.0, %v62
    %v73 = vlog2.pop %v71
    %v74 = vmul.f32 %v73, 0.6931472
    %v75 = vlog2.pop %v72
    %v76 = vmul.f32 %v75, 0.6931472
    %v77 = vmax.f32 %v74, -100.0
    %v78 = vmax.f32 %v76, -100.0
    %v79 = vmul.f32 %v63, %v69
    %v80 = vmul.f32 %v64, %v70
    %v81 = vsub.f32 1.0, %v63
    %v82 = vsub.f32 1.0, %v64
    %v83 = vmul.f32 %v81, %v77
    %v84 = vmul.f32 %v82, %v78
    %v85 = vadd.f32 %v79, %v83
    %v86 = vadd.f32 %v80, %v84
    %v87 = vmul.f32 %v85, 1.442695
    %v88 = vpow.pop %v87
    %v89 = vmul.f32 %v86, 1.442695
    %v90 = vpow.pop %v89
    %v91 = vsub.f32 0.0, %v85
    %v92 = vsub.f32 0.0, %v86
    %v93 = vsub.f32 1.0, %v88
    %v94 = vsub.f32 1.0, %v90
    %v95 = vmul.f32 %v93, %v93
    %v96 = vmul.f32 %v94, %v94
    %v97 = vmul.f32 %v95, %v91
    %v98 = vmul.f32 %v96, %v92
    %v99 = vld [vmem:[#allocation7] sm:$0xff]
    %v100 = vadd.f32 %v97, %v98
    %v101 = vadd.f32 %v99, %v100
    %102 = vst [vmem:[#allocation7] sm:$0xff] %v101
    // Predicated region
    $region22: #{tpu_custom_call.1} parent=1 // pred_check
      _
    $region23: #{tpu_custom_call.1} parent=1 // pred_check_branch
      %104 = sbr.rel (0) target = $region25
    $region24: #{tpu_custom_call.1} parent=1 // pred_region
      %106 = vsyncadd [#allocation4], 0
      %s108 = sshll.u32 [#allocation7], 4
      %s109 = int_to_ptr.vmem [resolvable:$true] %s108
      %s110 = sshll.u32 %s2, 4
      %s111 = int_to_ptr.hbm [resolvable:$true] %s110
      %113 = dma.vmem_to_hbm [thread:$0]  %s109, 128, %s111, [#allocation4]
    $region25: #{tpu_custom_call.1} parent=1 // pred_fallthru
      _
    // Predicated region
    $region26: #{tpu_custom_call.1} parent=1 // pred_check
      _
    $region27: #{tpu_custom_call.1} parent=1 // pred_check_branch
      %115 = sbr.rel (0) target = $region29
    $region28: #{tpu_custom_call.1} parent=1 // pred_region
      %117 = dma.done [#allocation4], 128
    $region29: #{tpu_custom_call.1} parent=1 // pred_fallthru
      _
    %118 = vsyncpa [#allocation3], 1
    %119 = vsyncpa [#allocation6], 1
    %120 = vsyncpa [#allocation4], 1

</llo_original>
